<compile_context>
chip_gen: v5e
topology: v5e:2x2
jax: 0.10.0
libtpu: 0.0.40
codegen_flags: <defaults>
</compile_context>

<pallas_src>
import functools

import jax
import jax.numpy as jnp
from jax import lax
from jax.experimental import pallas as pl
from jax.experimental.pallas import tpu as pltpu

_BN_EPS = 1e-5


def _round_up(x, m):
    return (x + m - 1) // m * m


def _largest_tile(dim, cap):
    """Largest multiple of 128 that divides `dim` (dim % 128 == 0) and <= cap."""
    t = max(128, min(dim, (cap // 128) * 128))
    while dim % t:
        t -= 128
    return t


def _vmem_limit_bytes():
    # Per-generation VMEM budget: ~48 MiB on v7x (64 MiB physical),
    # ~100 MiB on v5e/v6e (128 MiB physical).
    try:
        info = pltpu.get_tpu_info()
        cap = int(getattr(info, "vmem_capacity_bytes", 0) or 0)
        if cap > 0:
            return int(min(cap - 16 * 1024 * 1024, 100 * 1024 * 1024))
    except Exception:
        pass
    return 48 * 1024 * 1024


_VMEM_LIMIT = _vmem_limit_bytes()


# --------------------------------------------------------------------------
# Kernel 1: tiled GEMM  +  folded BN affine  (+ residual) (+ ReLU)
# --------------------------------------------------------------------------
def _gemm_bn_kernel(*refs, relu, has_res):
    if has_res:
        x_ref, w_ref, sc_ref, sh_ref, res_ref, o_ref, acc_ref = refs
    else:
        x_ref, w_ref, sc_ref, sh_ref, o_ref, acc_ref = refs
        res_ref = None
    k = pl.program_id(2)

    @pl.when(k == 0)
    def _():
        acc_ref[...] = jnp.zeros_like(acc_ref)

    acc_ref[...] += jnp.dot(x_ref[...], w_ref[...],
                            preferred_element_type=jnp.float32)

    @pl.when(k == pl.num_programs(2) - 1)
    def _():
        y = acc_ref[...] * sc_ref[...] + sh_ref[...]
        if has_res:
            y = y + res_ref[...].astype(jnp.float32)
        if relu:
            y = jnp.maximum(y, 0.0)
        o_ref[...] = y.astype(o_ref.dtype)


def gemm_bn(x, w, scale, shift, *, relu, residual=None,
            out_dtype=jnp.bfloat16):
    """relu?((x @ w) * scale + shift (+ residual)); bf16 MXU, f32 epilogue."""
    M, Kx = x.shape
    K, N = w.shape
    assert K % 128 == 0 and N % 128 == 0, (K, N)
    if Kx < K:                                  # e.g. stem K=147 -> 256
        x = jnp.pad(x, ((0, 0), (0, K - Kx)))

    # --- tiling -----------------------------------------------------------
    # tm covers M when it fits (<=512) so the KxN weight tiles are never
    # re-fetched per m-tile.
    tm = _round_up(M, 8) if M <= 512 else 512
    m_pad = _round_up(M, tm)
    grid_m = m_pad // tm
    # K (reduction) tiles of ~512.
    tk = _largest_tile(K, 512)
    # Big weight tiles (>=1 MB DMAs when M is small), but keep >=2 parallel
    # output tiles when the (M, N) grid would otherwise collapse to 1x1 so
    # both v7x TensorCores get work (harmless on single-TC v5e/v6e).
    tn = _largest_tile(N, 1024)
    if grid_m == 1 and tn == N and N >= 256 and (N // 2) % 128 == 0:
        tn = N // 2

    if m_pad != M:
        x = jnp.pad(x, ((0, m_pad - M), (0, 0)))
        if residual is not None:
            residual = jnp.pad(residual, ((0, m_pad - M), (0, 0)))

    args = [x.astype(jnp.bfloat16), w.astype(jnp.bfloat16),
            scale.astype(jnp.float32), shift.astype(jnp.float32)]
    in_specs = [
        pl.BlockSpec((tm, tk), lambda i, j, k: (i, k)),
        pl.BlockSpec((tk, tn), lambda i, j, k: (k, j)),
        pl.BlockSpec((1, tn), lambda i, j, k: (0, j)),
        pl.BlockSpec((1, tn), lambda i, j, k: (0, j)),
    ]
    if residual is not None:
        args.append(residual.astype(jnp.bfloat16))
        in_specs.append(pl.BlockSpec((tm, tn), lambda i, j, k: (i, j)))

    out = pl.pallas_call(
        functools.partial(_gemm_bn_kernel, relu=relu,
                          has_res=residual is not None),
        out_shape=jax.ShapeDtypeStruct((m_pad, N), out_dtype),
        grid=(grid_m, N // tn, K // tk),
        in_specs=in_specs,
        out_specs=pl.BlockSpec((tm, tn), lambda i, j, k: (i, j)),
        scratch_shapes=[pltpu.VMEM((tm, tn), jnp.float32)],
        compiler_params=pltpu.CompilerParams(
            dimension_semantics=("parallel", "parallel", "arbitrary"),
            vmem_limit_bytes=_VMEM_LIMIT),
    )(*args)
    return out[:M] if m_pad != M else out


# --------------------------------------------------------------------------
# Kernel 2: fused stride-1 3x3 conv + BN + ReLU (no HBM im2col)
# Flattened-padded-row trick: the whole batch is one (B*hp*wp, Cin) slab and
# each of the 9 taps is a single contiguous-slice matmul (hundreds of LHS
# rows).  Wrap columns / padding rows produce garbage rows that the wrapper
# slices away.  Grid is over Cout tiles only, so weights are fetched once.
# --------------------------------------------------------------------------
def _conv3x3_s1_kernel(x_ref, w_ref, sc_ref, sh_ref, o_ref, *, wp, relu):
    mout, tn = o_ref.shape
    acc = jnp.zeros((mout, tn), jnp.float32)
    for di in range(3):
        for dj in range(3):
            off = di * wp + dj
            lhs = x_ref[pl.ds(off, mout), :]          # (mout, Cin), static slice
            acc = acc + jnp.dot(lhs, w_ref[di, dj],
                                preferred_element_type=jnp.float32)
    y = acc * sc_ref[...] + sh_ref[...]
    if relu:
        y = jnp.maximum(y, 0.0)
    o_ref[...] = y.astype(o_ref.dtype)


def conv3x3_s1_bn(x_nhwc, p, *, relu=True):
    B, H, W, C = x_nhwc.shape
    N = p["cout"]
    hp, wp = H + 2, W + 2
    xp = jnp.pad(x_nhwc.astype(jnp.bfloat16), ((0, 0), (1, 1), (1, 1), (0, 0)))
    mout = B * hp * wp                       # flat output rows (incl. wrap cols)
    lx = _round_up(mout + 2 * wp + 2, 8)     # extra rows for the deepest tap
    x_flat = jnp.pad(xp.reshape(mout, C), ((0, lx - mout), (0, 0)))

    tn = N if N <= 128 else N // 2           # >=2 output tiles when possible
    y = pl.pallas_call(
        functools.partial(_conv3x3_s1_kernel, wp=wp, relu=relu),
        out_shape=jax.ShapeDtypeStruct((mout, N), jnp.bfloat16),
        grid=(N // tn,),
        in_specs=[
            pl.BlockSpec((lx, C), lambda n: (0, 0)),          # fetched once
            pl.BlockSpec((3, 3, C, tn), lambda n: (0, 0, 0, n)),
            pl.BlockSpec((1, tn), lambda n: (0, n)),
            pl.BlockSpec((1, tn), lambda n: (0, n)),
        ],
        out_specs=pl.BlockSpec((mout, tn), lambda n: (0, n)),
        compiler_params=pltpu.CompilerParams(
            dimension_semantics=("parallel",),
            vmem_limit_bytes=_VMEM_LIMIT),
    )(x_flat, p["w_tap"], p["scale"], p["shift"])
    return y.reshape(B, hp, wp, N)[:, :H, :W, :]


# --------------------------------------------------------------------------
# Kernel 3: fused 3x3 / stride-2 / pad-1 max-pool (VPU max over 9 taps)
# Column stride handled via even/odd column-phase inputs.
# --------------------------------------------------------------------------
def _maxpool_3x3_s2_kernel(xe_ref, xo_ref, o_ref):
    hout, wout, _ = o_ref.shape

    def row_body(ho, carry):
        m = None
        for di in range(3):
            r = 2 * ho + di
            cand = jnp.maximum(jnp.maximum(xe_ref[r, 0:wout, :],
                                           xo_ref[r, 0:wout, :]),
                               xe_ref[r, 1:1 + wout, :])
            m = cand if m is None else jnp.maximum(m, cand)
        o_ref[ho] = m.astype(o_ref.dtype)
        return carry

    lax.fori_loop(0, hout, row_body, None, unroll=True)


def maxpool_3x3_s2_p1(x_nhwc):
    B, H, W, C = x_nhwc.shape
    assert H % 2 == 0 and W % 2 == 0
    hout, wout = H // 2, W // 2
    xp = jnp.pad(x_nhwc.astype(jnp.bfloat16),
                 ((0, 0), (1, 1), (1, 1), (0, 0)),
                 constant_values=-jnp.inf)
    xe = xp[:, :, 0:2 * wout + 1:2, :]           # even input columns
    xo = xp[:, :, 1:2 * wout + 2:2, :]           # odd  input columns
    hp, wq = H + 2, wout + 1
    return pl.pallas_call(
        _maxpool_3x3_s2_kernel,
        out_shape=jax.ShapeDtypeStruct((B, hout, wout, C), jnp.bfloat16),
        grid=(B,),
        in_specs=[
            pl.BlockSpec((None, hp, wq, C), lambda b: (b, 0, 0, 0)),
            pl.BlockSpec((None, hp, wq, C), lambda b: (b, 0, 0, 0)),
        ],
        out_specs=pl.BlockSpec((None, hout, wout, C), lambda b: (b, 0, 0, 0)),
        compiler_params=pltpu.CompilerParams(
            dimension_semantics=("parallel",),
            vmem_limit_bytes=_VMEM_LIMIT),
    )(xe, xo)


# --------------------------------------------------------------------------
# Kernel 4: global average pool (B, H*W, C) -> (B, C), single grid step
# --------------------------------------------------------------------------
def _global_avgpool_kernel(x_ref, o_ref):
    o_ref[...] = jnp.mean(x_ref[...].astype(jnp.float32), axis=1)


def global_avgpool(x_nhwc):
    B, H, W, C = x_nhwc.shape
    x3 = x_nhwc.reshape(B, H * W, C)
    return pl.pallas_call(
        _global_avgpool_kernel,
        out_shape=jax.ShapeDtypeStruct((B, C), jnp.float32),
        grid=(1,),
        in_specs=[pl.BlockSpec((B, H * W, C), lambda i: (0, 0, 0))],
        out_specs=pl.BlockSpec((B, C), lambda i: (0, 0)),
        compiler_params=pltpu.CompilerParams(vmem_limit_bytes=_VMEM_LIMIT),
    )(x3)


# --------------------------------------------------------------------------
# JAX glue: im2col (stem + stride-2 3x3 only) and conv wrappers
# --------------------------------------------------------------------------
def im2col(x_nhwc, k, stride, pad):
    B, H, W, C = x_nhwc.shape
    xp = jnp.pad(x_nhwc, ((0, 0), (pad, pad), (pad, pad), (0, 0)))
    hout = (H + 2 * pad - k) // stride + 1
    wout = (W + 2 * pad - k) // stride + 1
    cols = []
    for i in range(k):
        for j in range(k):
            cols.append(xp[:, i:i + stride * hout:stride,
                           j:j + stride * wout:stride, :])
    patches = jnp.stack(cols, axis=3)            # (B, hout, wout, k*k, C)
    return patches.reshape(B * hout * wout, k * k * C), hout, wout


def conv_im2col_bn(x_nhwc, p, *, stride, pad, relu):
    k = p["ksize"]
    B = x_nhwc.shape[0]
    x2, hout, wout = im2col(x_nhwc.astype(jnp.bfloat16), k, stride, pad)
    y2 = gemm_bn(x2, p["w_gemm"], p["scale"], p["shift"], relu=relu)
    return y2.reshape(B, hout, wout, p["cout"])


def conv1x1_bn(x_nhwc, p, *, stride=1, relu, residual=None):
    if stride != 1:
        x_nhwc = x_nhwc[:, ::stride, ::stride, :]
    B, H, W, C = x_nhwc.shape
    x2 = x_nhwc.reshape(B * H * W, C)
    res2 = None
    if residual is not None:
        res2 = residual.reshape(B * H * W, residual.shape[-1])
    y2 = gemm_bn(x2, p["w_gemm"], p["scale"], p["shift"],
                 relu=relu, residual=res2)
    return y2.reshape(B, H, W, p["cout"])


# --------------------------------------------------------------------------
# Parameter construction (deterministic synthetic init, PyTorch shapes).
# Cout is padded to a multiple of 128 (lane-dense stores); the padded output
# channels carry scale=0/shift=0 and the downstream weights carry zero rows
# for them, so they stay exactly zero through the network.
# --------------------------------------------------------------------------
def make_conv_bn_params(key, cin_true, cin_carried, cout_true, ksize, *,
                        need_tap=False):
    k1, k2, k3, k4 = jax.random.split(key, 4)
    fan_in = cin_true * ksize * ksize
    w = jax.random.normal(k1, (cout_true, cin_true, ksize, ksize),
                          jnp.float32) * (2.0 / fan_in) ** 0.5
    # PyTorch layout (Cout, Cin, kh, kw) -> (kh, kw, Cin, Cout)
    w4 = jnp.transpose(w, (2, 3, 1, 0))
    cout_carried = _round_up(cout_true, 128)
    w4 = jnp.pad(w4, ((0, 0), (0, 0),
                      (0, cin_carried - cin_true),
                      (0, cout_carried - cout_true)))
    k_raw = ksize * ksize * cin_carried
    k_pad = _round_up(k_raw, 128)
    w2 = w4.reshape(k_raw, cout_carried)
    if k_pad != k_raw:
        w2 = jnp.pad(w2, ((0, k_pad - k_raw), (0, 0)))

    gamma = 1.0 + 0.01 * jax.random.normal(k2, (cout_true,), jnp.float32)
    beta = 0.01 * jax.random.normal(k3, (cout_true,), jnp.float32)
    running_mean = 0.01 * jax.random.normal(k4, (cout_true,), jnp.float32)
    running_var = jnp.ones((cout_true,), jnp.float32)
    scale = gamma / jnp.sqrt(running_var + _BN_EPS)
    shift = beta - running_mean * scale
    pad_n = cout_carried - cout_true
    p = {
        "w_gemm": w2.astype(jnp.bfloat16),
        "scale": jnp.pad(scale, (0, pad_n)).reshape(1, cout_carried),
        "shift": jnp.pad(shift, (0, pad_n)).reshape(1, cout_carried),
        "cout": cout_carried,
        "ksize": ksize,
    }
    if need_tap:
        p["w_tap"] = w4.astype(jnp.bfloat16)     # (3,3,cin_carried,cout_carried)
    return p


def make_bottleneck_params(key, inplanes_true, inplanes_carried, width, stride):
    keys = jax.random.split(key, 4)
    c1 = make_conv_bn_params(keys[0], inplanes_true, inplanes_carried, width, 1)
    c2 = make_conv_bn_params(keys[1], width, c1["cout"], width, 3,
                             need_tap=(stride == 1))
    c3 = make_conv_bn_params(keys[2], width, c2["cout"], width * 4, 1)
    p = {"conv1": c1, "conv2": c2, "conv3": c3, "stride": stride}
    if stride != 1 or inplanes_true != width * 4:
        p["downsample"] = make_conv_bn_params(
            keys[3], inplanes_true, inplanes_carried, width * 4, 1)
    return p


def make_encoder_params(key, embed_size):
    keys = jax.random.split(key, 7)
    params = {"conv1": make_conv_bn_params(keys[0], 3, 3, 64, 7)}
    inplanes_true, inplanes_carried = 64, params["conv1"]["cout"]
    layer_cfg = [(64, 3, 1), (128, 4, 2), (256, 6, 2), (512, 3, 2)]  # resnet50
    for li, (width, blocks, stride) in enumerate(layer_cfg):
        bkeys = jax.random.split(keys[1 + li], blocks)
        blks = []
        for bi in range(blocks):
            s = stride if bi == 0 else 1
            blks.append(make_bottleneck_params(
                bkeys[bi], inplanes_true, inplanes_carried, width, s))
            inplanes_true = width * 4
            inplanes_carried = blks[-1]["conv3"]["cout"]
        params[f"layer{li + 1}"] = blks
    # nn.Linear(2048, embed_size)
    k_w, k_b = jax.random.split(keys[5], 2)
    in_features = 2048
    bound = 1.0 / in_features ** 0.5
    w = jax.random.uniform(k_w, (embed_size, in_features), jnp.float32,
                           -bound, bound)
    b = jax.random.uniform(k_b, (embed_size,), jnp.float32, -bound, bound)
    n_pad = _round_up(embed_size, 128)
    params["embed_w"] = jnp.pad(jnp.transpose(w),
                                ((0, 0), (0, n_pad - embed_size))
                                ).astype(jnp.bfloat16)
    params["embed_scale"] = jnp.pad(jnp.ones((embed_size,), jnp.float32),
                                    (0, n_pad - embed_size)).reshape(1, n_pad)
    params["embed_shift"] = jnp.pad(b, (0, n_pad - embed_size)
                                    ).reshape(1, n_pad)
    params["embed_size"] = embed_size
    return params


# --------------------------------------------------------------------------
# Forward pass (matches EncoderCNN.forward)
# --------------------------------------------------------------------------
def bottleneck_forward(x, p):
    s = p["stride"]
    out = conv1x1_bn(x, p["conv1"], relu=True)
    if s == 1:
        out = conv3x3_s1_bn(out, p["conv2"], relu=True)
    else:  # three stride-2 3x3 convs fall back to im2col + tiled GEMM
        out = conv_im2col_bn(out, p["conv2"], stride=s, pad=1, relu=True)
    if "downsample" in p:
        identity = conv1x1_bn(x, p["downsample"], stride=s, relu=False)
    else:
        identity = x
    # conv3 + BN + residual add + ReLU fused into one Pallas GEMM epilogue
    return conv1x1_bn(out, p["conv3"], relu=True, residual=identity)


def encoder_cnn_forward(params, images_nchw):
    # NCHW (PyTorch) -> NHWC (channels-last so C maps to the 128-lane axis)
    x = jnp.transpose(images_nchw.astype(jnp.float32), (0, 2, 3, 1))
    x = conv_im2col_bn(x, params["conv1"], stride=2, pad=3, relu=True)
    x = maxpool_3x3_s2_p1(x)
    for li in range(1, 5):
        for blk in params[f"layer{li}"]:
            x = bottleneck_forward(x, blk)
    feats = global_avgpool(x)                        # (B, 2048) f32
    out = gemm_bn(feats, params["embed_w"], params["embed_scale"],
                  params["embed_shift"], relu=False, out_dtype=jnp.float32)
    return out[:, :params["embed_size"]]


# --------------------------------------------------------------------------
# Main
# --------------------------------------------------------------------------
if __name__ == "__main__":
    root = jax.random.PRNGKey(0)
    k_params, k_img, k_chk = jax.random.split(root, 3)

    EMBED_SIZE = 256
    BATCH, IMG = 2, 64   # ResNet-50 stride-32 -> 2x2 spatial before the pool

    bfr = lambda a: a.astype(jnp.bfloat16).astype(jnp.float32)
    kk = [jax.random.fold_in(k_chk, i) for i in range(8)]

    # ---- tiled GEMM + affine + residual + relu self-check ------------------
    xa = jax.random.normal(kk[0], (100, 256), jnp.float32)
    wa = jax.random.normal(kk[1], (256, 128), jnp.float32)
    sc = jax.random.normal(kk[2], (128,), jnp.float32)
    sh = jax.random.normal(kk[3], (128,), jnp.float32)
    rs = jax.random.normal(kk[4], (100, 128), jnp.float32)
    got = gemm_bn(xa, wa, sc.reshape(1, -1), sh.reshape(1, -1),
                  relu=True, residual=rs, out_dtype=jnp.float32)
    ref = jnp.maximum(
        jnp.dot(bfr(xa), bfr(wa), precision=jax.lax.Precision.HIGHEST)
        * sc[None, :] + sh[None, :] + bfr(rs), 0.0)
    assert jnp.allclose(got, ref, atol=1e-2, rtol=1e-2)

    # ---- fused stride-1 3x3 conv self-check --------------------------------
    pc = make_conv_bn_params(kk[5], 64, 128, 64, 3, need_tap=True)
    xc = jax.random.normal(kk[6], (2, 8, 8, 128), jnp.float32)
    got = conv3x3_s1_bn(xc, pc, relu=True).astype(jnp.float32)
    xpad = jnp.pad(bfr(xc), ((0, 0), (1, 1), (1, 1), (0, 0)))
    wt = pc["w_tap"].astype(jnp.float32)
    acc = jnp.zeros((2, 8, 8, pc["cout"]), jnp.float32)
    for di in range(3):
        for dj in range(3):
            acc = acc + jnp.einsum("bhwc,cn->bhwn",
                                   xpad[:, di:di + 8, dj:dj + 8, :],
                                   wt[di, dj],
                                   precision=jax.lax.Precision.HIGHEST)
    refc = jnp.maximum(acc * pc["scale"].reshape(1, 1, 1, -1)
                       + pc["shift"].reshape(1, 1, 1, -1), 0.0)
    assert jnp.allclose(got, refc, atol=5e-2, rtol=5e-2)

    # ---- fused max-pool self-check ------------------------------------------
    xm = jax.random.normal(kk[7], (2, 16, 16, 128), jnp.float32)
    got = maxpool_3x3_s2_p1(xm).astype(jnp.float32)
    xpf = jnp.pad(bfr(xm), ((0, 0), (1, 1), (1, 1), (0, 0)),
                  constant_values=-jnp.inf)
    refm = None
    for di in range(3):
        for dj in range(3):
            v = xpf[:, di::2, dj::2, :][:, :8, :8, :]
            refm = v if refm is None else jnp.maximum(refm, v)
    assert jnp.allclose(got, refm)

    # ---- global average pool self-check -------------------------------------
    xg = jax.random.normal(jax.random.fold_in(k_chk, 20), (2, 2, 2, 256),
                           jnp.float32)
    got = global_avgpool(xg.astype(jnp.bfloat16))
    refg = jnp.mean(bfr(xg).reshape(2, 4, 256), axis=1)
    assert jnp.allclose(got, refg, atol=1e-4, rtol=1e-4)

    # ---- full EncoderCNN forward --------------------------------------------
    params = make_encoder_params(k_params, EMBED_SIZE)
    images = jax.random.normal(k_img, (BATCH, 3, IMG, IMG), jnp.float32)

    features = encoder_cnn_forward(params, images)
    features = jax.block_until_ready(features)

    assert features.shape == (BATCH, EMBED_SIZE), features.shape
    assert features.dtype == jnp.float32
    assert bool(jnp.all(jnp.isfinite(features)))
    print("KERNEL_OK")
</pallas_src>

<mosaic_0001>
module attributes {stable_mosaic.version = 11 : i64} {
  func.func @_gemm_bn_kernel(%arg0: i32, %arg1: i32, %arg2: i32, %arg3: memref<104x256xbf16, #tpu.memory_space<vmem>>, %arg4: memref<256x128xbf16, #tpu.memory_space<vmem>>, %arg5: memref<1x128xf32, #tpu.memory_space<vmem>>, %arg6: memref<1x128xf32, #tpu.memory_space<vmem>>, %arg7: memref<104x128xbf16, #tpu.memory_space<vmem>>, %arg8: memref<104x128xf32, #tpu.memory_space<vmem>>, %arg9: memref<104x128xf32, #tpu.memory_space<vmem>>) attributes {dimension_semantics = [#tpu.dimension_semantics<parallel>, #tpu.dimension_semantics<parallel>, #tpu.dimension_semantics<arbitrary>], iteration_bounds = array<i64: 1, 1, 1>, scalar_prefetch = 0 : i64, scratch_operands = 1 : i64, tpu.core_type = #tpu.core_type<tc>, window_params = [{transform_indices = @transform_0, window_bounds = array<i64: 104, 256>}, {transform_indices = @transform_1, window_bounds = array<i64: 256, 128>}, {transform_indices = @transform_2, window_bounds = array<i64: 1, 128>}, {transform_indices = @transform_3, window_bounds = array<i64: 1, 128>}, {transform_indices = @transform_4, window_bounds = array<i64: 104, 128>}, {transform_indices = @transform_5, window_bounds = array<i64: 104, 128>}]} {
    %c0_i32 = arith.constant 0 : i32
    %0 = arith.cmpi eq, %arg2, %c0_i32 : i32
    %1 = arith.extui %0 : i1 to i32
    %c0_i32_0 = arith.constant 0 : i32
    %2 = arith.cmpi ne, %1, %c0_i32_0 : i32
    scf.if %2 {
      %cst_10 = arith.constant 0.000000e+00 : f32
      %12 = vector.broadcast %cst_10 : f32 to vector<104x128xf32>
      %c0_11 = arith.constant 0 : index
      %c0_12 = arith.constant 0 : index
      %13 = vector.load %arg9[%c0_11, %c0_12] : memref<104x128xf32, #tpu.memory_space<vmem>>, vector<104x128xf32>
      tpu.vector_store %arg9[%c0_11, %c0_12], %12 {strides = array<i32>} : memref<104x128xf32, #tpu.memory_space<vmem>>, vector<104x128xf32>,
    } else {
    }
    %c0 = arith.constant 0 : index
    %c0_1 = arith.constant 0 : index
    %3 = vector.load %arg9[%c0, %c0_1] : memref<104x128xf32, #tpu.memory_space<vmem>>, vector<104x128xf32>
    %c0_2 = arith.constant 0 : index
    %c0_3 = arith.constant 0 : index
    %4 = vector.load %arg3[%c0_2, %c0_3] : memref<104x256xbf16, #tpu.memory_space<vmem>>, vector<104x256xbf16>
    %c0_4 = arith.constant 0 : index
    %c0_5 = arith.constant 0 : index
    %5 = vector.load %arg4[%c0_4, %c0_5] : memref<256x128xbf16, #tpu.memory_space<vmem>>, vector<256x128xbf16>
    %cst = arith.constant dense<0.000000e+00> : vector<104x128xf32>
    %6 = tpu.matmul %4, %5, %cst {dimension_numbers = #tpu.dot_dimension_numbers<[1], [0], [0], [1], [0, 0, 1, 1], [], []>} : vector<104x256xbf16>, vector<256x128xbf16>, vector<104x128xf32> -> vector<104x128xf32>
    %7 = arith.addf %3, %6 : vector<104x128xf32>
    %c0_6 = arith.constant 0 : index
    %c0_7 = arith.constant 0 : index
    %8 = vector.load %arg9[%c0_6, %c0_7] : memref<104x128xf32, #tpu.memory_space<vmem>>, vector<104x128xf32>
    tpu.vector_store %arg9[%c0_6, %c0_7], %7 {strides = array<i32>} : memref<104x128xf32, #tpu.memory_space<vmem>>, vector<104x128xf32>,
    %c0_i32_8 = arith.constant 0 : i32
    %9 = arith.cmpi eq, %arg2, %c0_i32_8 : i32
    %10 = arith.extui %9 : i1 to i32
    %c0_i32_9 = arith.constant 0 : i32
    %11 = arith.cmpi ne, %10, %c0_i32_9 : i32
    scf.if %11 {
      %c0_10 = arith.constant 0 : index
      %c0_11 = arith.constant 0 : index
      %12 = vector.load %arg9[%c0_10, %c0_11] : memref<104x128xf32, #tpu.memory_space<vmem>>, vector<104x128xf32>
      %c0_12 = arith.constant 0 : index
      %c0_13 = arith.constant 0 : index
      %13 = vector.load %arg5[%c0_12, %c0_13] : memref<1x128xf32, #tpu.memory_space<vmem>>, vector<1x128xf32>
      %14 = vector.broadcast %13 : vector<1x128xf32> to vector<104x128xf32>
      %15 = arith.mulf %12, %14 : vector<104x128xf32>
      %c0_14 = arith.constant 0 : index
      %c0_15 = arith.constant 0 : index
      %16 = vector.load %arg6[%c0_14, %c0_15] : memref<1x128xf32, #tpu.memory_space<vmem>>, vector<1x128xf32>
      %17 = vector.broadcast %16 : vector<1x128xf32> to vector<104x128xf32>
      %18 = arith.addf %15, %17 : vector<104x128xf32>
      %c0_16 = arith.constant 0 : index
      %c0_17 = arith.constant 0 : index
      %19 = vector.load %arg7[%c0_16, %c0_17] : memref<104x128xbf16, #tpu.memory_space<vmem>>, vector<104x128xbf16>
      %20 = arith.extf %19 : vector<104x128xbf16> to vector<104x128xf32>
      %21 = arith.addf %18, %20 : vector<104x128xf32>
      %cst_18 = arith.constant 0.000000e+00 : f32
      %22 = vector.broadcast %cst_18 : f32 to vector<104x128xf32>
      %23 = arith.maximumf %21, %22 : vector<104x128xf32>
      %c0_19 = arith.constant 0 : index
      %c0_20 = arith.constant 0 : index
      %24 = vector.load %arg8[%c0_19, %c0_20] : memref<104x128xf32, #tpu.memory_space<vmem>>, vector<104x128xf32>
      tpu.vector_store %arg8[%c0_19, %c0_20], %23 {strides = array<i32>} : memref<104x128xf32, #tpu.memory_space<vmem>>, vector<104x128xf32>,
    } else {
    }
    return
  }
  func.func @transform_0(%arg0: i32, %arg1: i32, %arg2: i32) -> (i32, i32) {
    %c0_i32 = arith.constant 0 : i32
    return %arg0, %arg2 : i32, i32
  }
  func.func @transform_1(%arg0: i32, %arg1: i32, %arg2: i32) -> (i32, i32) {
    %c0_i32 = arith.constant 0 : i32
    return %arg2, %arg1 : i32, i32
  }
  func.func @transform_2(%arg0: i32, %arg1: i32, %arg2: i32) -> (i32, i32) {
    %c0_i32 = arith.constant 0 : i32
    %c0_i32_0 = arith.constant 0 : i32
    return %c0_i32, %arg1 : i32, i32
  }
  func.func @transform_3(%arg0: i32, %arg1: i32, %arg2: i32) -> (i32, i32) {
    %c0_i32 = arith.constant 0 : i32
    %c0_i32_0 = arith.constant 0 : i32
    return %c0_i32, %arg1 : i32, i32
  }
  func.func @transform_4(%arg0: i32, %arg1: i32, %arg2: i32) -> (i32, i32) {
    %c0_i32 = arith.constant 0 : i32
    return %arg0, %arg1 : i32, i32
  }
  func.func @transform_5(%arg0: i32, %arg1: i32, %arg2: i32) -> (i32, i32) {
    %c0_i32 = arith.constant 0 : i32
    return %arg0, %arg1 : i32, i32
  }
}

</mosaic_0001>

<llo_original>
// kernel: tpu_custom_call.1
$region0: #{tpu_custom_call.1}
  #allocation0 [shape = 'u32[]', space=smem, size = 0x4, offset = 0x4, fixed_abs, tag = 'smem constant byte address 0x4 - core index']
  #allocation1 [shape = 'u32[72,128]{1,0:T(1,128)}', space=vmem, size = 0x9000, scoped, tag = 'internal scratch']
  #allocation2 [shape = 'f32[104,128]{1,0:T(8,128)}', space=vmem, size = 0xd000, scoped, tag = 'scratch operand']
  %s0 = inlined_call_operand.hbm [shape: bf16[104,256], index: 0, kind: input, shape index: {}]
  %s1 = inlined_call_operand.hbm [shape: bf16[256,128], index: 1, kind: input, shape index: {}]
  %s2 = inlined_call_operand.vmem [shape: f32[1,128], index: 2, kind: input, shape index: {}]
  %s3 = inlined_call_operand.vmem [shape: f32[1,128], index: 3, kind: input, shape index: {}]
  %s4 = inlined_call_operand.hbm [shape: bf16[104,128], index: 4, kind: input, shape index: {}]
  %s5 = inlined_call_operand.hbm [shape: f32[104,128], index: 5, kind: output, shape index: {}]
  %s6 = sld [smem:[#allocation0]]
  $region50: #{tpu_custom_call.1} parent=0
    _
  %s8 = ssub.s32 1, %s6
  %s9 = scalar_select 0, %s8, %s6
  $region1: #{tpu_custom_call.1} parent=0
    #allocation3 [shape = 'u8[53248]{0}', space=vmem, size = 0xd000, scoped, tag = 'input window, operand 0, single buffered']
    #allocation4 [shape = 's32[1]{0}', space=sflag, size = 0x4, scoped, tag = 'scoped memory for tpu_custom_call.1']
    #allocation5 [shape = 's32[1]{0}', space=sflag, size = 0x4, scoped, tag = 'scoped memory for tpu_custom_call.1']
    #allocation6 [shape = 'u8[65536]{0}', space=vmem, size = 0x10000, scoped, tag = 'input window, operand 1, single buffered']
    #allocation7 [shape = 's32[1]{0}', space=sflag, size = 0x4, scoped, tag = 'scoped memory for tpu_custom_call.1']
    #allocation8 [shape = 'u8[26624]{0}', space=vmem, size = 0x6800, scoped, tag = 'input window, operand 4, single buffered']
    #allocation9 [shape = 'u8[53248]{0}', space=vmem, size = 0xd000, scoped, tag = 'output window, operand 0, single buffered']
    %10 = vsyncpa [#allocation4], 0
    %11 = vsyncpa [#allocation7], 0
    %12 = vsyncpa [#allocation5], 0
    // Predicated region
    $region2: #{tpu_custom_call.1} parent=1 // pred_check
      _
    $region3: #{tpu_custom_call.1} parent=1 // pred_check_branch
      %14 = sbr.rel (0) target = $region5
    $region4: #{tpu_custom_call.1} parent=1 // pred_region
      %16 = vsyncadd [#allocation4], 0
      %s17 = sshll.u32 %s0, 4
      %s18 = int_to_ptr.hbm [resolvable:$true] %s17
      %s19 = sshll.u32 [#allocation3], 4
      %s20 = int_to_ptr.vmem [resolvable:$true] %s19
      %25 = dma.hbm_to_vmem [thread:$0]  %s18, 1664, %s20, [#allocation4], 128, 128, 8
    $region5: #{tpu_custom_call.1} parent=1 // pred_fallthru
      _
    // Predicated region
    $region6: #{tpu_custom_call.1} parent=1 // pred_check
      _
    $region7: #{tpu_custom_call.1} parent=1 // pred_check_branch
      %27 = sbr.rel (0) target = $region9
    $region8: #{tpu_custom_call.1} parent=1 // pred_region
      %29 = vsyncadd [#allocation7], 0
      %s30 = sshll.u32 %s1, 4
      %s31 = int_to_ptr.hbm [resolvable:$true] %s30
      %s32 = sshll.u32 [#allocation6], 4
      %s33 = int_to_ptr.vmem [resolvable:$true] %s32
      %38 = dma.hbm_to_vmem [thread:$0]  %s31, 2048, %s33, [#allocation7], 64, 64, 4
    $region9: #{tpu_custom_call.1} parent=1 // pred_fallthru
      _
    // Predicated region
    $region10: #{tpu_custom_call.1} parent=1 // pred_check
      _
    $region11: #{tpu_custom_call.1} parent=1 // pred_check_branch
      %40 = sbr.rel (0) target = $region13
    $region12: #{tpu_custom_call.1} parent=1 // pred_region
      _
    $region13: #{tpu_custom_call.1} parent=1 // pred_fallthru
      _
    // Predicated region
    $region14: #{tpu_custom_call.1} parent=1 // pred_check
      _
    $region15: #{tpu_custom_call.1} parent=1 // pred_check_branch
      %42 = sbr.rel (0) target = $region17
    $region16: #{tpu_custom_call.1} parent=1 // pred_region
      _
    $region17: #{tpu_custom_call.1} parent=1 // pred_fallthru
      _
    // Predicated region
    $region18: #{tpu_custom_call.1} parent=1 // pred_check
      _
    $region19: #{tpu_custom_call.1} parent=1 // pred_check_branch
      %44 = sbr.rel (0) target = $region21
    $region20: #{tpu_custom_call.1} parent=1 // pred_region
      %46 = vsyncadd [#allocation7], 0
      %s47 = sshll.u32 %s4, 4
      %s48 = int_to_ptr.hbm [resolvable:$true] %s47
      %s49 = sshll.u32 [#allocation8], 4
      %s50 = int_to_ptr.vmem [resolvable:$true] %s49
      %55 = dma.hbm_to_vmem [thread:$0]  %s48, 832, %s50, [#allocation7], 64, 64, 4
    $region21: #{tpu_custom_call.1} parent=1 // pred_fallthru
      _
    // Predicated region
    $region22: #{tpu_custom_call.1} parent=1 // pred_check
      _
    $region23: #{tpu_custom_call.1} parent=1 // pred_check_branch
      %57 = sbr.rel (0) target = $region25
    $region24: #{tpu_custom_call.1} parent=1 // pred_region
      %59 = dma.done [#allocation4], 1664
    $region25: #{tpu_custom_call.1} parent=1 // pred_fallthru
      _
    // Predicated region
    $region26: #{tpu_custom_call.1} parent=1 // pred_check
      _
    $region27: #{tpu_custom_call.1} parent=1 // pred_check_branch
      %61 = sbr.rel (0) target = $region29
    $region28: #{tpu_custom_call.1} parent=1 // pred_region
      %63 = dma.done [#allocation7], 2048
    $region29: #{tpu_custom_call.1} parent=1 // pred_fallthru
      _
    // Predicated region
    $region30: #{tpu_custom_call.1} parent=1 // pred_check
      _
    $region31: #{tpu_custom_call.1} parent=1 // pred_check_branch
      %65 = sbr.rel (0) target = $region33
    $region32: #{tpu_custom_call.1} parent=1 // pred_region
      %67 = dma.done [#allocation7], 832
    $region33: #{tpu_custom_call.1} parent=1 // pred_fallthru
      _
    %p68 = scmp.eq.s32.totalorder 0, 0
    // Predicated region
    $region34: #{tpu_custom_call.1} parent=1 // pred_check
      %p69 = pneg %p68
    $region35: #{tpu_custom_call.1} parent=1 // pred_check_branch
      %71 = sbr.rel (%p69) target = $region37
    $region36: #{tpu_custom_call.1} parent=1 // pred_region
      %72 = vst [vmem:[#allocation2] sm:$0xff] 0.0
      %73 = vst [vmem:[#allocation2 + $0x8] sm:$0xff] 0.0
      %74 = vst [vmem:[#allocation2 + $0x10] sm:$0xff] 0.0
      %75 = vst [vmem:[#allocation2 + $0x18] sm:$0xff] 0.0
      %76 = vst [vmem:[#allocation2 + $0x20] sm:$0xff] 0.0
      %77 = vst [vmem:[#allocation2 + $0x28] sm:$0xff] 0.0
      %78 = vst [vmem:[#allocation2 + $0x30] sm:$0xff] 0.0
      %79 = vst [vmem:[#allocation2 + $0x38] sm:$0xff] 0.0
      %80 = vst [vmem:[#allocation2 + $0x40] sm:$0xff] 0.0
      %81 = vst [vmem:[#allocation2 + $0x48] sm:$0xff] 0.0
      %82 = vst [vmem:[#allocation2 + $0x50] sm:$0xff] 0.0
      %83 = vst [vmem:[#allocation2 + $0x58] sm:$0xff] 0.0
      %84 = vst [vmem:[#allocation2 + $0x60] sm:$0xff] 0.0
    $region37: #{tpu_custom_call.1} parent=1 // pred_fallthru
      _
    %v85 = vld [vmem:[#allocation2] sm:$0xff]
    %v86 = vld [vmem:[#allocation2 + $0x8] sm:$0xff]
    %v87 = vld [vmem:[#allocation2 + $0x10] sm:$0xff]
    %v88 = vld [vmem:[#allocation2 + $0x18] sm:$0xff]
    %v89 = vld [vmem:[#allocation2 + $0x20] sm:$0xff]
    %v90 = vld [vmem:[#allocation2 + $0x28] sm:$0xff]
    %v91 = vld [vmem:[#allocation2 + $0x30] sm:$0xff]
    %v92 = vld [vmem:[#allocation2 + $0x38] sm:$0xff]
    %v93 = vld [vmem:[#allocation2 + $0x40] sm:$0xff]
    %v94 = vld [vmem:[#allocation2 + $0x48] sm:$0xff]
    %v95 = vld [vmem:[#allocation2 + $0x50] sm:$0xff]
    %v96 = vld [vmem:[#allocation2 + $0x58] sm:$0xff]
    %v97 = vld [vmem:[#allocation2 + $0x60] sm:$0xff]
    %v98 = vld [vmem:[#allocation3] sm:$0xff]
    %v99 = vld [vmem:[#allocation3 + $0x8] sm:$0xff]
    %v100 = vld [vmem:[#allocation3 + $0x10] sm:$0xff]
    %v101 = vld [vmem:[#allocation3 + $0x18] sm:$0xff]
    %v102 = vld [vmem:[#allocation3 + $0x20] sm:$0xff]
    %v103 = vld [vmem:[#allocation3 + $0x28] sm:$0xff]
    %v104 = vld [vmem:[#allocation3 + $0x30] sm:$0xff]
    %v105 = vld [vmem:[#allocation3 + $0x38] sm:$0xff]
    %v106 = vld [vmem:[#allocation3 + $0x40] sm:$0xff]
    %v107 = vld [vmem:[#allocation3 + $0x48] sm:$0xff]
    %v108 = vld [vmem:[#allocation3 + $0x50] sm:$0xff]
    %v109 = vld [vmem:[#allocation3 + $0x58] sm:$0xff]
    %v110 = vld [vmem:[#allocation3 + $0x60] sm:$0xff]
    %v111 = vld [vmem:[#allocation6] sm:$0xf]
    %v112 = vld [vmem:[#allocation6 + $0x4] sm:$0xf]
    %v113 = vld [vmem:[#allocation6 + $0x8] sm:$0xf]
    %v114 = vld [vmem:[#allocation6 + $0xc] sm:$0xf]
    %v115 = vld [vmem:[#allocation6 + $0x10] sm:$0xf]
    %v116 = vld [vmem:[#allocation6 + $0x14] sm:$0xf]
    %v117 = vld [vmem:[#allocation6 + $0x18] sm:$0xf]
    %v118 = vld [vmem:[#allocation6 + $0x1c] sm:$0xf]
    %v119 = vld [vmem:[#allocation6 + $0x20] sm:$0xf]
    %v120 = vld [vmem:[#allocation6 + $0x24] sm:$0xf]
    %v121 = vld [vmem:[#allocation6 + $0x28] sm:$0xf]
    %v122 = vld [vmem:[#allocation6 + $0x2c] sm:$0xf]
    %v123 = vld [vmem:[#allocation6 + $0x30] sm:$0xf]
    %v124 = vld [vmem:[#allocation6 + $0x34] sm:$0xf]
    %v125 = vld [vmem:[#allocation6 + $0x38] sm:$0xf]
    %v126 = vld [vmem:[#allocation6 + $0x3c] sm:$0xf]
    %v127 = vld [vmem:[#allocation6 + $0x40] sm:$0xf]
    %v128 = vld [vmem:[#allocation6 + $0x44] sm:$0xf]
    %v129 = vld [vmem:[#allocation6 + $0x48] sm:$0xf]
    %v130 = vld [vmem:[#allocation6 + $0x4c] sm:$0xf]
    %v131 = vld [vmem:[#allocation6 + $0x50] sm:$0xf]
    %v132 = vld [vmem:[#allocation6 + $0x54] sm:$0xf]
    %v133 = vld [vmem:[#allocation6 + $0x58] sm:$0xf]
    %v134 = vld [vmem:[#allocation6 + $0x5c] sm:$0xf]
    %v135 = vld [vmem:[#allocation6 + $0x60] sm:$0xf]
    %v136 = vld [vmem:[#allocation6 + $0x64] sm:$0xf]
    %v137 = vld [vmem:[#allocation6 + $0x68] sm:$0xf]
    %v138 = vld [vmem:[#allocation6 + $0x6c] sm:$0xf]
    %v139 = vld [vmem:[#allocation6 + $0x70] sm:$0xf]
    %v140 = vld [vmem:[#allocation6 + $0x74] sm:$0xf]
    %v141 = vld [vmem:[#allocation6 + $0x78] sm:$0xf]
    %v142 = vld [vmem:[#allocation6 + $0x7c] sm:$0xf]
    %v156 = vunpack.c.l.b16 %v98
    %v157 = vunpack.c.h.b16 %v98
    %v158 = vunpack.c.l.b16 %v99
    %v159 = vunpack.c.h.b16 %v99
    %v160 = vunpack.c.l.b16 %v100
    %v161 = vunpack.c.h.b16 %v100
    %v162 = vunpack.c.l.b16 %v101
    %v163 = vunpack.c.h.b16 %v101
    %v164 = vunpack.c.l.b16 %v102
    %v165 = vunpack.c.h.b16 %v102
    %v166 = vunpack.c.l.b16 %v103
    %v167 = vunpack.c.h.b16 %v103
    %v168 = vunpack.c.l.b16 %v104
    %v169 = vunpack.c.h.b16 %v104
    %v170 = vunpack.c.l.b16 %v105
    %v171 = vunpack.c.h.b16 %v105
    %v172 = vunpack.c.l.b16 %v106
    %v173 = vunpack.c.h.b16 %v106
    %v174 = vunpack.c.l.b16 %v107
    %v175 = vunpack.c.h.b16 %v107
    %v176 = vunpack.c.l.b16 %v108
    %v177 = vunpack.c.h.b16 %v108
    %v178 = vunpack.c.l.b16 %v109
    %v179 = vunpack.c.h.b16 %v109
    %v180 = vunpack.c.l.b16 %v110
    %v181 = vunpack.c.h.b16 %v110
    %v182 = vpack.c.b16 %v158, %v156
    %v183 = vpack.c.b16 %v159, %v157
    %v184 = vpack.c.b16 %v162, %v160
    %v185 = vpack.c.b16 %v163, %v161
    %v186 = vpack.c.b16 %v166, %v164
    %v187 = vpack.c.b16 %v167, %v165
    %v188 = vpack.c.b16 %v170, %v168
    %v189 = vpack.c.b16 %v171, %v169
    %v190 = vpack.c.b16 %v174, %v172
    %v191 = vpack.c.b16 %v175, %v173
    %v192 = vpack.c.b16 %v178, %v176
    %v193 = vpack.c.b16 %v179, %v177
    %v194 = vpack.c.b16 %v180, %v180
    %v195 = vpack.c.b16 %v181, %v181
    %v242 = vunpack.c.l.b16 %v111
    %v243 = vunpack.c.l.b16 %v112
    %v244 = vunpack.c.l.b16 %v113
    %v245 = vunpack.c.l.b16 %v114
    %v246 = vunpack.c.l.b16 %v115
    %v247 = vunpack.c.l.b16 %v116
    %v248 = vunpack.c.l.b16 %v117
    %v249 = vunpack.c.l.b16 %v118
    %v250 = vunpack.c.l.b16 %v119
    %v251 = vunpack.c.l.b16 %v120
    %v252 = vunpack.c.l.b16 %v121
    %v253 = vunpack.c.l.b16 %v122
    %v254 = vunpack.c.l.b16 %v123
    %v255 = vunpack.c.l.b16 %v124
    %v256 = vunpack.c.l.b16 %v125
    %v257 = vunpack.c.l.b16 %v126
    %v258 = vunpack.c.l.b16 %v127
    %v259 = vunpack.c.l.b16 %v128
    %v260 = vunpack.c.l.b16 %v129
    %v261 = vunpack.c.l.b16 %v130
    %v262 = vunpack.c.l.b16 %v131
    %v263 = vunpack.c.l.b16 %v132
    %v264 = vunpack.c.l.b16 %v133
    %v265 = vunpack.c.l.b16 %v134
    %v266 = vunpack.c.l.b16 %v135
    %v267 = vunpack.c.l.b16 %v136
    %v268 = vunpack.c.l.b16 %v137
    %v269 = vunpack.c.l.b16 %v138
    %v270 = vunpack.c.l.b16 %v139
    %v271 = vunpack.c.l.b16 %v140
    %v272 = vunpack.c.l.b16 %v141
    %v273 = vunpack.c.l.b16 %v142
    %v274 = vpack.c.b16 %v243, %v242
    %v275 = vpack.c.b16 %v245, %v244
    %v276 = vpack.c.b16 %v247, %v246
    %v277 = vpack.c.b16 %v249, %v248
    %v278 = vpack.c.b16 %v251, %v250
    %v279 = vpack.c.b16 %v253, %v252
    %v280 = vpack.c.b16 %v255, %v254
    %v281 = vpack.c.b16 %v257, %v256
    %v282 = vpack.c.b16 %v259, %v258
    %v283 = vpack.c.b16 %v261, %v260
    %v284 = vpack.c.b16 %v263, %v262
    %v285 = vpack.c.b16 %v265, %v264
    %v286 = vpack.c.b16 %v267, %v266
    %v287 = vpack.c.b16 %v269, %v268
    %v288 = vpack.c.b16 %v271, %v270
    %v289 = vpack.c.b16 %v273, %v272
    %306 = vmatpush.bf16.msra.mxu0 %v281
    %307 = vmatpush.bf16.msra.mxu0 %v280
    %308 = vmatpush.bf16.msra.mxu0 %v279
    %309 = vmatpush.bf16.msra.mxu0 %v278
    %310 = vmatpush.bf16.msra.mxu0 %v277
    %311 = vmatpush.bf16.msra.mxu0 %v276
    %312 = vmatpush.bf16.msra.mxu0 %v275
    %313 = vmatpush.bf16.msra.mxu0 %v274
    %314 = vmatmul.bf16.gmra.mxu0 %v182
    %v315 = vpop.f32.mrf.mxu0
    %v316 = vadd.f32 0.0, %v315
    %v317 = vpop.f32.mrf.mxu0
    %v318 = vadd.f32 0.0, %v317
    %319 = vmatmul.bf16.gmra.mxu0 %v184
    %v320 = vpop.f32.mrf.mxu0
    %v321 = vadd.f32 0.0, %v320
    %v322 = vpop.f32.mrf.mxu0
    %v323 = vadd.f32 0.0, %v322
    %324 = vmatmul.bf16.gmra.mxu0 %v186
    %v325 = vpop.f32.mrf.mxu0
    %v326 = vadd.f32 0.0, %v325
    %v327 = vpop.f32.mrf.mxu0
    %v328 = vadd.f32 0.0, %v327
    %329 = vmatmul.bf16.gmra.mxu0 %v188
    %v330 = vpop.f32.mrf.mxu0
    %v331 = vadd.f32 0.0, %v330
    %v332 = vpop.f32.mrf.mxu0
    %v333 = vadd.f32 0.0, %v332
    %334 = vmatmul.bf16.gmra.mxu0 %v190
    %v335 = vpop.f32.mrf.mxu0
    %v336 = vadd.f32 0.0, %v335
    %v337 = vpop.f32.mrf.mxu0
    %v338 = vadd.f32 0.0, %v337
    %339 = vmatmul.bf16.gmra.mxu0 %v192
    %v340 = vpop.f32.mrf.mxu0
    %v341 = vadd.f32 0.0, %v340
    %v342 = vpop.f32.mrf.mxu0
    %v343 = vadd.f32 0.0, %v342
    %344 = vmatmul.bf16.gmra.mxu0 %v194
    %v345 = vpop.f32.mrf.mxu0
    %v346 = vadd.f32 0.0, %v345
    %v347 = vpop.f32.mrf.mxu0
    %348 = vdwg.mxu0
    %349 = vmatpush.bf16.msra.mxu0 %v289
    %350 = vmatpush.bf16.msra.mxu0 %v288
    %351 = vmatpush.bf16.msra.mxu0 %v287
    %352 = vmatpush.bf16.msra.mxu0 %v286
    %353 = vmatpush.bf16.msra.mxu0 %v285
    %354 = vmatpush.bf16.msra.mxu0 %v284
    %355 = vmatpush.bf16.msra.mxu0 %v283
    %356 = vmatpush.bf16.msra.mxu0 %v282
    %357 = vmatmul.bf16.gmra.mxu0 %v183
    %v358 = vpop.f32.mrf.mxu0
    %v359 = vadd.f32 %v316, %v358
    %v360 = vpop.f32.mrf.mxu0
    %v361 = vadd.f32 %v318, %v360
    %362 = vmatmul.bf16.gmra.mxu0 %v185
    %v363 = vpop.f32.mrf.mxu0
    %v364 = vadd.f32 %v321, %v363
    %v365 = vpop.f32.mrf.mxu0
    %v366 = vadd.f32 %v323, %v365
    %367 = vmatmul.bf16.gmra.mxu0 %v187
    %v368 = vpop.f32.mrf.mxu0
    %v369 = vadd.f32 %v326, %v368
    %v370 = vpop.f32.mrf.mxu0
    %v371 = vadd.f32 %v328, %v370
    %372 = vmatmul.bf16.gmra.mxu0 %v189
    %v373 = vpop.f32.mrf.mxu0
    %v374 = vadd.f32 %v331, %v373
    %v375 = vpop.f32.mrf.mxu0
    %v376 = vadd.f32 %v333, %v375
    %377 = vmatmul.bf16.gmra.mxu0 %v191
    %v378 = vpop.f32.mrf.mxu0
    %v379 = vadd.f32 %v336, %v378
    %v380 = vpop.f32.mrf.mxu0
    %v381 = vadd.f32 %v338, %v380
    %382 = vmatmul.bf16.gmra.mxu0 %v193
    %v383 = vpop.f32.mrf.mxu0
    %v384 = vadd.f32 %v341, %v383
    %v385 = vpop.f32.mrf.mxu0
    %v386 = vadd.f32 %v343, %v385
    %387 = vmatmul.bf16.gmra.mxu0 %v195
    %v388 = vpop.f32.mrf.mxu0
    %v389 = vadd.f32 %v346, %v388
    %v390 = vpop.f32.mrf.mxu0
    %391 = vdwg.mxu0
    %v392 = vadd.f32 %v85, %v359
    %v393 = vadd.f32 %v86, %v361
    %v394 = vadd.f32 %v87, %v364
    %v395 = vadd.f32 %v88, %v366
    %v396 = vadd.f32 %v89, %v369
    %v397 = vadd.f32 %v90, %v371
    %v398 = vadd.f32 %v91, %v374
    %v399 = vadd.f32 %v92, %v376
    %v400 = vadd.f32 %v93, %v379
    %v401 = vadd.f32 %v94, %v381
    %v402 = vadd.f32 %v95, %v384
    %v403 = vadd.f32 %v96, %v386
    %v404 = vadd.f32 %v97, %v389
    %405 = vst [vmem:[#allocation2] sm:$0xff] %v392
    %406 = vst [vmem:[#allocation2 + $0x8] sm:$0xff] %v393
    %407 = vst [vmem:[#allocation2 + $0x10] sm:$0xff] %v394
    %408 = vst [vmem:[#allocation2 + $0x18] sm:$0xff] %v395
    %409 = vst [vmem:[#allocation2 + $0x20] sm:$0xff] %v396
    %410 = vst [vmem:[#allocation2 + $0x28] sm:$0xff] %v397
    %411 = vst [vmem:[#allocation2 + $0x30] sm:$0xff] %v398
    %412 = vst [vmem:[#allocation2 + $0x38] sm:$0xff] %v399
    %413 = vst [vmem:[#allocation2 + $0x40] sm:$0xff] %v400
    %414 = vst [vmem:[#allocation2 + $0x48] sm:$0xff] %v401
    %415 = vst [vmem:[#allocation2 + $0x50] sm:$0xff] %v402
    %416 = vst [vmem:[#allocation2 + $0x58] sm:$0xff] %v403
    %417 = vst [vmem:[#allocation2 + $0x60] sm:$0xff] %v404
    // Predicated region
    $region38: #{tpu_custom_call.1} parent=1 // pred_check
      %p418 = pneg %p68
    $region39: #{tpu_custom_call.1} parent=1 // pred_check_branch
      %420 = sbr.rel (%p418) target = $region41
    $region40: #{tpu_custom_call.1} parent=1 // pred_region
      %v421 = vld [vmem:[#allocation2] sm:$0xff]
      %v422 = vld [vmem:[#allocation2 + $0x8] sm:$0xff]
      %v423 = vld [vmem:[#allocation2 + $0x10] sm:$0xff]
      %v424 = vld [vmem:[#allocation2 + $0x18] sm:$0xff]
      %v425 = vld [vmem:[#allocation2 + $0x20] sm:$0xff]
      %v426 = vld [vmem:[#allocation2 + $0x28] sm:$0xff]
      %v427 = vld [vmem:[#allocation2 + $0x30] sm:$0xff]
      %v428 = vld [vmem:[#allocation2 + $0x38] sm:$0xff]
      %v429 = vld [vmem:[#allocation2 + $0x40] sm:$0xff]
      %v430 = vld [vmem:[#allocation2 + $0x48] sm:$0xff]
      %v431 = vld [vmem:[#allocation2 + $0x50] sm:$0xff]
      %v432 = vld [vmem:[#allocation2 + $0x58] sm:$0xff]
      %v433 = vld [vmem:[#allocation2 + $0x60] sm:$0xff]
      %v434 = vld [vmem:[%s2] sm:$0x1]
      %v436 = vperm.slane %v434, 0
      %v438 = vmul.f32 %v421, %v436
      %v439 = vmul.f32 %v422, %v436
      %v440 = vmul.f32 %v423, %v436
      %v441 = vmul.f32 %v424, %v436
      %v442 = vmul.f32 %v425, %v436
      %v443 = vmul.f32 %v426, %v436
      %v444 = vmul.f32 %v427, %v436
      %v445 = vmul.f32 %v428, %v436
      %v446 = vmul.f32 %v429, %v436
      %v447 = vmul.f32 %v430, %v436
      %v448 = vmul.f32 %v431, %v436
      %v449 = vmul.f32 %v432, %v436
      %v450 = vmul.f32 %v433, %v436
      %v451 = vld [vmem:[%s3] sm:$0x1]
      %v453 = vperm.slane %v451, 0
      %v455 = vadd.f32 %v438, %v453
      %v456 = vadd.f32 %v439, %v453
      %v457 = vadd.f32 %v440, %v453
      %v458 = vadd.f32 %v441, %v453
      %v459 = vadd.f32 %v442, %v453
      %v460 = vadd.f32 %v443, %v453
      %v461 = vadd.f32 %v444, %v453
      %v462 = vadd.f32 %v445, %v453
      %v463 = vadd.f32 %v446, %v453
      %v464 = vadd.f32 %v447, %v453
      %v465 = vadd.f32 %v448, %v453
      %v466 = vadd.f32 %v449, %v453
      %v467 = vadd.f32 %v450, %v453
      %v468 = vld [vmem:[#allocation8] sm:$0xf]
      %v469 = vld [vmem:[#allocation8 + $0x4] sm:$0xf]
      %v470 = vld [vmem:[#allocation8 + $0x8] sm:$0xf]
      %v471 = vld [vmem:[#allocation8 + $0xc] sm:$0xf]
      %v472 = vld [vmem:[#allocation8 + $0x10] sm:$0xf]
      %v473 = vld [vmem:[#allocation8 + $0x14] sm:$0xf]
      %v474 = vld [vmem:[#allocation8 + $0x18] sm:$0xf]
      %v475 = vld [vmem:[#allocation8 + $0x1c] sm:$0xf]
      %v476 = vld [vmem:[#allocation8 + $0x20] sm:$0xf]
      %v477 = vld [vmem:[#allocation8 + $0x24] sm:$0xf]
      %v478 = vld [vmem:[#allocation8 + $0x28] sm:$0xf]
      %v479 = vld [vmem:[#allocation8 + $0x2c] sm:$0xf]
      %v480 = vld [vmem:[#allocation8 + $0x30] sm:$0xf]
      %v481 = vunpack.c.l.bf16 %v468
      %v482 = vunpack.c.l.bf16 %v469
      %v483 = vunpack.c.l.bf16 %v470
      %v484 = vunpack.c.l.bf16 %v471
      %v485 = vunpack.c.l.bf16 %v472
      %v486 = vunpack.c.l.bf16 %v473
      %v487 = vunpack.c.l.bf16 %v474
      %v488 = vunpack.c.l.bf16 %v475
      %v489 = vunpack.c.l.bf16 %v476
      %v490 = vunpack.c.l.bf16 %v477
      %v491 = vunpack.c.l.bf16 %v478
      %v492 = vunpack.c.l.bf16 %v479
      %v493 = vunpack.c.l.bf16 %v480
      %v494 = vadd.f32 %v455, %v481
      %v495 = vadd.f32 %v456, %v482
      %v496 = vadd.f32 %v457, %v483
      %v497 = vadd.f32 %v458, %v484
      %v498 = vadd.f32 %v459, %v485
      %v499 = vadd.f32 %v460, %v486
      %v500 = vadd.f32 %v461, %v487
      %v501 = vadd.f32 %v462, %v488
      %v502 = vadd.f32 %v463, %v489
      %v503 = vadd.f32 %v464, %v490
      %v504 = vadd.f32 %v465, %v491
      %v505 = vadd.f32 %v466, %v492
      %v506 = vadd.f32 %v467, %v493
      %v507 = vmax.f32 %v494, 0.0
      %v508 = vmax.f32 %v495, 0.0
      %v509 = vmax.f32 %v496, 0.0
      %v510 = vmax.f32 %v497, 0.0
      %v511 = vmax.f32 %v498, 0.0
      %v512 = vmax.f32 %v499, 0.0
      %v513 = vmax.f32 %v500, 0.0
      %v514 = vmax.f32 %v501, 0.0
      %v515 = vmax.f32 %v502, 0.0
      %v516 = vmax.f32 %v503, 0.0
      %v517 = vmax.f32 %v504, 0.0
      %v518 = vmax.f32 %v505, 0.0
      %v519 = vmax.f32 %v506, 0.0
      %520 = vst [vmem:[#allocation9] sm:$0xff] %v507
      %521 = vst [vmem:[#allocation9 + $0x8] sm:$0xff] %v508
      %522 = vst [vmem:[#allocation9 + $0x10] sm:$0xff] %v509
      %523 = vst [vmem:[#allocation9 + $0x18] sm:$0xff] %v510
      %524 = vst [vmem:[#allocation9 + $0x20] sm:$0xff] %v511
      %525 = vst [vmem:[#allocation9 + $0x28] sm:$0xff] %v512
      %526 = vst [vmem:[#allocation9 + $0x30] sm:$0xff] %v513
      %527 = vst [vmem:[#allocation9 + $0x38] sm:$0xff] %v514
      %528 = vst [vmem:[#allocation9 + $0x40] sm:$0xff] %v515
      %529 = vst [vmem:[#allocation9 + $0x48] sm:$0xff] %v516
      %530 = vst [vmem:[#allocation9 + $0x50] sm:$0xff] %v517
      %531 = vst [vmem:[#allocation9 + $0x58] sm:$0xff] %v518
      %532 = vst [vmem:[#allocation9 + $0x60] sm:$0xff] %v519
    $region41: #{tpu_custom_call.1} parent=1 // pred_fallthru
      _
    // Predicated region
    $region42: #{tpu_custom_call.1} parent=1 // pred_check
      _
    $region43: #{tpu_custom_call.1} parent=1 // pred_check_branch
      %534 = sbr.rel (0) target = $region45
    $region44: #{tpu_custom_call.1} parent=1 // pred_region
      %536 = vsyncadd [#allocation5], 0
      %s537 = sshll.u32 [#allocation9], 4
      %s538 = int_to_ptr.vmem [resolvable:$true] %s537
      %s539 = sshll.u32 %s5, 4
      %s540 = int_to_ptr.hbm [resolvable:$true] %s539
      %545 = dma.vmem_to_hbm [thread:$0]  %s538, 1664, %s540, [#allocation5], 128, 128, 8
    $region45: #{tpu_custom_call.1} parent=1 // pred_fallthru
      _
    // Predicated region
    $region46: #{tpu_custom_call.1} parent=1 // pred_check
      _
    $region47: #{tpu_custom_call.1} parent=1 // pred_check_branch
      %547 = sbr.rel (0) target = $region49
    $region48: #{tpu_custom_call.1} parent=1 // pred_region
      %549 = dma.done [#allocation5], 1664
    $region49: #{tpu_custom_call.1} parent=1 // pred_fallthru
      _
    %550 = vsyncpa [#allocation4], 1
    %551 = vsyncpa [#allocation7], 1
    %552 = vsyncpa [#allocation5], 1

</llo_original>
